<compile_context>
chip_gen: v5e
topology: v5e:2x2
jax: 0.10.0
libtpu: 0.0.40
codegen_flags: <defaults>
</compile_context>

<pallas_src>
import numpy as np
import jax
import jax.numpy as jnp
from jax.experimental import pallas as pl
from jax.experimental.pallas import tpu as pltpu


# ----------------------------------------------------------------------------
# Pallas kernel: fused two-head linear projection.
#   x: (tile, Cin)   w: (Cin, 2*Cout)   b: (1, 2*Cout)
#   o1, o2: (tile, Cout)  -- one per critic head
# ----------------------------------------------------------------------------
def _dual_head_linear_kernel(x_ref, w_ref, b_ref, o1_ref, o2_ref):
    acc = jnp.dot(x_ref[...], w_ref[...],
                  preferred_element_type=jnp.float32)          # MXU, (tile, 2*Cout)
    acc = acc + b_ref[...]
    cout = o1_ref.shape[-1]
    o1_ref[...] = acc[:, :cout].astype(o1_ref.dtype)
    o2_ref[...] = acc[:, cout:].astype(o2_ref.dtype)


def _round_up(x, m):
    return ((x + m - 1) // m) * m


def _choose_row_tiling(rows, cin, target_block_bytes=2 << 20):
    """Return (row_tile, padded_rows); row_tile divides padded_rows exactly.

    Small problems: one block spanning the whole array (full-extent blocks are
    legal regardless of the (8,128) rule), so no padding and a 1-step grid.
    Large problems: ~2 MiB row blocks (multiple of 8 sublanes) -> multi-step
    grid that amortizes per-step overhead and parallelizes across v7x cores.
    """
    bytes_per_row = max(1, cin) * 4
    max_tile = max(8, (target_block_bytes // bytes_per_row) // 8 * 8)
    if rows <= max_tile:
        return rows, rows
    tile = max_tile
    return tile, _round_up(rows, tile)


def fused_critic_linear(x, w_fused, b_fused, cout):
    """x:(R,Cin) @ w_fused:(Cin,2*Cout) + b_fused -> two (R,Cout) head outputs."""
    R, Cin = x.shape
    Ctot = w_fused.shape[1]
    tile, Rpad = _choose_row_tiling(R, Cin)
    if Rpad != R:
        x = jnp.pad(x, ((0, Rpad - R), (0, 0)))
    grid = Rpad // tile

    flops = 2 * Rpad * Cin * Ctot
    bytes_accessed = 4 * (Rpad * Cin + Cin * Ctot + Ctot + 2 * Rpad * cout)

    out1, out2 = pl.pallas_call(
        _dual_head_linear_kernel,
        out_shape=(
            jax.ShapeDtypeStruct((Rpad, cout), jnp.float32),
            jax.ShapeDtypeStruct((Rpad, cout), jnp.float32),
        ),
        grid=(grid,),
        in_specs=[
            pl.BlockSpec((tile, Cin), lambda i: (i, 0)),
            pl.BlockSpec((Cin, Ctot), lambda i: (0, 0)),   # invariant across grid
            pl.BlockSpec((1, Ctot), lambda i: (0, 0)),     # invariant across grid
        ],
        out_specs=(
            pl.BlockSpec((tile, cout), lambda i: (i, 0)),
            pl.BlockSpec((tile, cout), lambda i: (i, 0)),
        ),
        compiler_params=pltpu.CompilerParams(
            dimension_semantics=("parallel",),
        ),
        cost_estimate=pl.CostEstimate(
            flops=flops, transcendentals=0, bytes_accessed=bytes_accessed),
    )(x, w_fused, b_fused)

    if Rpad != R:
        out1 = out1[:R]
        out2 = out2[:R]
    return out1, out2


# ----------------------------------------------------------------------------
# Critic module (JAX/Pallas)
# ----------------------------------------------------------------------------
class CriticPallas:
    def __init__(self, input_shape, output_channels, in_channels, key):
        # Mirror the PyTorch padding bookkeeping exactly (float div truncated
        # into an int array, same as the original module).
        self.in_shape = tuple(input_shape)
        max_dim = int(np.max(np.array(self.in_shape[:2])))
        self.max_dim = max_dim
        self.padding = np.zeros((3, 2), dtype=int)
        pad = (max_dim - np.array(self.in_shape[:2])) / 2
        self.padding[:2] = pad.reshape(2, 1)

        self.output_channels = output_channels
        self.in_channels = in_channels

        # Deterministic Xavier-uniform init (utils.init_xavier_weights analogue).
        k1, k2 = jax.random.split(key)
        limit = float(np.sqrt(6.0 / (in_channels + output_channels)))
        self.w1 = jax.random.uniform(
            k1, (in_channels, output_channels), jnp.float32, -limit, limit)
        self.b1 = jnp.zeros((output_channels,), jnp.float32)
        self.w2 = jax.random.uniform(
            k2, (in_channels, output_channels), jnp.float32, -limit, limit)
        self.b2 = jnp.zeros((output_channels,), jnp.float32)

        # Pre-fuse the two heads so the activations are read from HBM once.
        self.w_fused = jnp.concatenate([self.w1, self.w2], axis=1)     # (Cin, 2*Cout)
        self.b_fused = jnp.concatenate([self.b1, self.b2]).reshape(1, -1)

        # Single jitted forward: crop + reshape + fused pallas matmul + rearrange
        # all live in one XLA program (one dispatch per call).
        self._forward = jax.jit(self._forward_impl)

    def _forward_impl(self, h_nhwc, w_fused, b_fused):
        # Crop the spatial padding BEFORE the per-pixel decode (static slice).
        r0 = int(self.padding[0, 0]); r1 = r0 + self.in_shape[0]
        c0 = int(self.padding[1, 0]); c1 = c0 + self.in_shape[1]
        h_crop = h_nhwc[:, r0:r1, c0:c1, :]                   # (B, h, w, Cin)
        B, Hc, Wc, Cin = h_crop.shape
        flat = h_crop.reshape(B * Hc * Wc, Cin)
        out1, out2 = fused_critic_linear(flat, w_fused, b_fused,
                                         self.output_channels)
        # (B*h*w, Cout) -> (B, h*w*Cout): contiguous `b (h w c)` rearrange.
        out1 = out1.reshape(B, Hc * Wc * self.output_channels)
        out2 = out2.reshape(B, Hc * Wc * self.output_channels)
        return out1, out2

    def __call__(self, h_nhwc):
        return self._forward(h_nhwc, self.w_fused, self.b_fused)


# ----------------------------------------------------------------------------
# Reference (plain JAX) for a correctness check: decode full map, crop after,
# exactly as the PyTorch Critic does.
# ----------------------------------------------------------------------------
def _reference(critic, h_nhwc):
    def dec(w, b):
        y = jnp.einsum("bhwc,cd->bhwd", h_nhwc, w) + b
        c0 = critic.padding[:2, 0]
        c1 = c0 + np.array(critic.in_shape[:2])
        y = y[:, int(c0[0]):int(c1[0]), int(c0[1]):int(c1[1]), :]
        return y.reshape(y.shape[0], -1)
    return dec(critic.w1, critic.b1), dec(critic.w2, critic.b2)


if __name__ == "__main__":
    key = jax.random.PRNGKey(0)
    k_h, k_params = jax.random.split(key)

    # Small config: workspace in_shape (16, 12) -> padded square 16x16 input.
    in_shape = (16, 12, 3)
    output_channels = 3
    in_channels = 32
    B = 2
    Hmax = int(np.max(np.array(in_shape[:2])))   # 16

    critic = CriticPallas(in_shape, output_channels, in_channels, k_params)

    # h: (B, Hmax, Hmax, Cin) NHWC feature map fed to both critic heads.
    h = jax.random.normal(k_h, (B, Hmax, Hmax, in_channels), jnp.float32)

    out1, out2 = critic(h)
    jax.block_until_ready((out1, out2))

    ref1, ref2 = _reference(critic, h)
    assert out1.shape == (B, in_shape[0] * in_shape[1] * output_channels)
    assert out2.shape == (B, in_shape[0] * in_shape[1] * output_channels)
    np.testing.assert_allclose(np.asarray(out1), np.asarray(ref1), atol=1e-4, rtol=1e-4)
    np.testing.assert_allclose(np.asarray(out2), np.asarray(ref2), atol=1e-4, rtol=1e-4)

    print("KERNEL_OK")
</pallas_src>

<mosaic_0001>
module attributes {stable_mosaic.version = 11 : i64} {
  func.func @_dual_head_linear_kernel(%arg0: i32, %arg1: memref<384x32xf32, #tpu.memory_space<vmem>>, %arg2: memref<32x6xf32, #tpu.memory_space<vmem>>, %arg3: memref<1x6xf32, #tpu.memory_space<vmem>>, %arg4: memref<384x3xf32, #tpu.memory_space<vmem>>, %arg5: memref<384x3xf32, #tpu.memory_space<vmem>>) attributes {dimension_semantics = [#tpu.dimension_semantics<parallel>], iteration_bounds = array<i64: 1>, scalar_prefetch = 0 : i64, scratch_operands = 0 : i64, tpu.core_type = #tpu.core_type<tc>, window_params = [{transform_indices = @transform_0, window_bounds = array<i64: 384, 32>}, {pipeline_mode = #tpu.pipeline_mode<synchronous>, transform_indices = @transform_1, window_bounds = array<i64: 32, 6>}, {pipeline_mode = #tpu.pipeline_mode<synchronous>, transform_indices = @transform_2, window_bounds = array<i64: 1, 6>}, {transform_indices = @transform_3, window_bounds = array<i64: 384, 3>}, {transform_indices = @transform_4, window_bounds = array<i64: 384, 3>}]} {
    %c0 = arith.constant 0 : index
    %c0_0 = arith.constant 0 : index
    %0 = vector.load %arg1[%c0, %c0_0] : memref<384x32xf32, #tpu.memory_space<vmem>>, vector<384x32xf32>
    %c0_1 = arith.constant 0 : index
    %c0_2 = arith.constant 0 : index
    %1 = vector.load %arg2[%c0_1, %c0_2] : memref<32x6xf32, #tpu.memory_space<vmem>>, vector<32x6xf32>
    %cst = arith.constant dense<0.000000e+00> : vector<384x6xf32>
    %2 = tpu.matmul %0, %1, %cst {dimension_numbers = #tpu.dot_dimension_numbers<[1], [0], [0], [1], [0, 0, 1, 1], [], []>} : vector<384x32xf32>, vector<32x6xf32>, vector<384x6xf32> -> vector<384x6xf32>
    %c0_3 = arith.constant 0 : index
    %c0_4 = arith.constant 0 : index
    %3 = vector.load %arg3[%c0_3, %c0_4] : memref<1x6xf32, #tpu.memory_space<vmem>>, vector<1x6xf32>
    %4 = vector.broadcast %3 : vector<1x6xf32> to vector<384x6xf32>
    %5 = arith.addf %2, %4 : vector<384x6xf32>
    %6 = vector.extract_strided_slice %5 {offsets = [0, 0], sizes = [384, 3], strides = [1, 1]} : vector<384x6xf32> to vector<384x3xf32>
    %c0_5 = arith.constant 0 : index
    %c0_6 = arith.constant 0 : index
    %7 = vector.load %arg4[%c0_5, %c0_6] : memref<384x3xf32, #tpu.memory_space<vmem>>, vector<384x3xf32>
    tpu.vector_store %arg4[%c0_5, %c0_6], %6 {strides = array<i32>} : memref<384x3xf32, #tpu.memory_space<vmem>>, vector<384x3xf32>,
    %8 = vector.extract_strided_slice %5 {offsets = [0, 3], sizes = [384, 3], strides = [1, 1]} : vector<384x6xf32> to vector<384x3xf32>
    %c0_7 = arith.constant 0 : index
    %c0_8 = arith.constant 0 : index
    %9 = vector.load %arg5[%c0_7, %c0_8] : memref<384x3xf32, #tpu.memory_space<vmem>>, vector<384x3xf32>
    tpu.vector_store %arg5[%c0_7, %c0_8], %8 {strides = array<i32>} : memref<384x3xf32, #tpu.memory_space<vmem>>, vector<384x3xf32>,
    return
  }
  func.func @transform_0(%arg0: i32) -> (i32, i32) {
    %c0_i32 = arith.constant 0 : i32
    %c0_i32_0 = arith.constant 0 : i32
    return %arg0, %c0_i32 : i32, i32
  }
  func.func @transform_1(%arg0: i32) -> (i32, i32) {
    %c0_i32 = arith.constant 0 : i32
    %c0_i32_0 = arith.constant 0 : i32
    %c0_i32_1 = arith.constant 0 : i32
    return %c0_i32, %c0_i32_0 : i32, i32
  }
  func.func @transform_2(%arg0: i32) -> (i32, i32) {
    %c0_i32 = arith.constant 0 : i32
    %c0_i32_0 = arith.constant 0 : i32
    %c0_i32_1 = arith.constant 0 : i32
    return %c0_i32, %c0_i32_0 : i32, i32
  }
  func.func @transform_3(%arg0: i32) -> (i32, i32) {
    %c0_i32 = arith.constant 0 : i32
    %c0_i32_0 = arith.constant 0 : i32
    return %arg0, %c0_i32 : i32, i32
  }
  func.func @transform_4(%arg0: i32) -> (i32, i32) {
    %c0_i32 = arith.constant 0 : i32
    %c0_i32_0 = arith.constant 0 : i32
    return %arg0, %c0_i32 : i32, i32
  }
}

</mosaic_0001>

<llo_original>
// kernel: _forward_impl.1
$region0: #{_forward_impl.1}
  #allocation0 [shape = 'u32[]', space=smem, size = 0x4, offset = 0x4, fixed_abs, tag = 'smem constant byte address 0x4 - core index']
  #allocation1 [shape = 'u32[72,128]{1,0:T(1,128)}', space=vmem, size = 0x9000, scoped, tag = 'internal scratch']
  %s0 = inlined_call_operand.vmem [shape: f32[384,32], index: 0, kind: input, shape index: {}]
  %s1 = inlined_call_operand.vmem [shape: f32[32,6], index: 1, kind: input, shape index: {}]
  %s2 = inlined_call_operand.vmem [shape: f32[1,6], index: 2, kind: input, shape index: {}]
  %s3 = inlined_call_operand.vmem [shape: f32[384,3], index: 3, kind: output, shape index: {0}]
  %s4 = inlined_call_operand.vmem [shape: f32[384,3], index: 4, kind: output, shape index: {1}]
  %5 = xla_tuple %s3, %s4
  %s6 = sld [smem:[#allocation0]]
  $region30: #{_forward_impl.1} parent=0
    _
  %s8 = ssub.s32 1, %s6
  %s9 = scalar_select 0, %s8, %s6
  // Predicated region
  $region2: #{_forward_impl.1} parent=0 // pred_check
    _
  $region3: #{_forward_impl.1} parent=0 // pred_check_branch
    %11 = sbr.rel (0) target = $region5
  $region4: #{_forward_impl.1} parent=0 // pred_region
    _
  $region5: #{_forward_impl.1} parent=0 // pred_fallthru
    _
  // Predicated region
  $region6: #{_forward_impl.1} parent=0 // pred_check
    _
  $region7: #{_forward_impl.1} parent=0 // pred_check_branch
    %13 = sbr.rel (0) target = $region9
  $region8: #{_forward_impl.1} parent=0 // pred_region
    _
  $region9: #{_forward_impl.1} parent=0 // pred_fallthru
    _
  // Predicated region
  $region10: #{_forward_impl.1} parent=0 // pred_check
    _
  $region11: #{_forward_impl.1} parent=0 // pred_check_branch
    %15 = sbr.rel (0) target = $region13
  $region12: #{_forward_impl.1} parent=0 // pred_region
    _
  $region13: #{_forward_impl.1} parent=0 // pred_fallthru
    _
  %v16 = vld [vmem:[%s0] sm:$0xff]
  %v17 = vld [vmem:[%s0 + $0x8] sm:$0xff]
  %v18 = vld [vmem:[%s0 + $0x10] sm:$0xff]
  %v19 = vld [vmem:[%s0 + $0x18] sm:$0xff]
  %v20 = vld [vmem:[%s0 + $0x20] sm:$0xff]
  %v21 = vld [vmem:[%s0 + $0x28] sm:$0xff]
  %v22 = vld [vmem:[%s0 + $0x30] sm:$0xff]
  %v23 = vld [vmem:[%s0 + $0x38] sm:$0xff]
  %v24 = vld [vmem:[%s0 + $0x40] sm:$0xff]
  %v25 = vld [vmem:[%s0 + $0x48] sm:$0xff]
  %v26 = vld [vmem:[%s0 + $0x50] sm:$0xff]
  %v27 = vld [vmem:[%s0 + $0x58] sm:$0xff]
  %v28 = vld [vmem:[%s0 + $0x60] sm:$0xff]
  %v29 = vld [vmem:[%s0 + $0x68] sm:$0xff]
  %v30 = vld [vmem:[%s0 + $0x70] sm:$0xff]
  %v31 = vld [vmem:[%s0 + $0x78] sm:$0xff]
  %v32 = vld [vmem:[%s0 + $0x80] sm:$0xff]
  %v33 = vld [vmem:[%s0 + $0x88] sm:$0xff]
  %v34 = vld [vmem:[%s0 + $0x90] sm:$0xff]
  %v35 = vld [vmem:[%s0 + $0x98] sm:$0xff]
  %v36 = vld [vmem:[%s0 + $0xa0] sm:$0xff]
  %v37 = vld [vmem:[%s0 + $0xa8] sm:$0xff]
  %v38 = vld [vmem:[%s0 + $0xb0] sm:$0xff]
  %v39 = vld [vmem:[%s0 + $0xb8] sm:$0xff]
  %v40 = vld [vmem:[%s0 + $0xc0] sm:$0xff]
  %v41 = vld [vmem:[%s0 + $0xc8] sm:$0xff]
  %v42 = vld [vmem:[%s0 + $0xd0] sm:$0xff]
  %v43 = vld [vmem:[%s0 + $0xd8] sm:$0xff]
  %v44 = vld [vmem:[%s0 + $0xe0] sm:$0xff]
  %v45 = vld [vmem:[%s0 + $0xe8] sm:$0xff]
  %v46 = vld [vmem:[%s0 + $0xf0] sm:$0xff]
  %v47 = vld [vmem:[%s0 + $0xf8] sm:$0xff]
  %v48 = vld [vmem:[%s0 + $0x100] sm:$0xff]
  %v49 = vld [vmem:[%s0 + $0x108] sm:$0xff]
  %v50 = vld [vmem:[%s0 + $0x110] sm:$0xff]
  %v51 = vld [vmem:[%s0 + $0x118] sm:$0xff]
  %v52 = vld [vmem:[%s0 + $0x120] sm:$0xff]
  %v53 = vld [vmem:[%s0 + $0x128] sm:$0xff]
  %v54 = vld [vmem:[%s0 + $0x130] sm:$0xff]
  %v55 = vld [vmem:[%s0 + $0x138] sm:$0xff]
  %v56 = vld [vmem:[%s0 + $0x140] sm:$0xff]
  %v57 = vld [vmem:[%s0 + $0x148] sm:$0xff]
  %v58 = vld [vmem:[%s0 + $0x150] sm:$0xff]
  %v59 = vld [vmem:[%s0 + $0x158] sm:$0xff]
  %v60 = vld [vmem:[%s0 + $0x160] sm:$0xff]
  %v61 = vld [vmem:[%s0 + $0x168] sm:$0xff]
  %v62 = vld [vmem:[%s0 + $0x170] sm:$0xff]
  %v63 = vld [vmem:[%s0 + $0x178] sm:$0xff]
  %v64 = vld [vmem:[%s1] sm:$0xff]
  %v65 = vld [vmem:[%s1 + $0x8] sm:$0xff]
  %v66 = vld [vmem:[%s1 + $0x10] sm:$0xff]
  %v67 = vld [vmem:[%s1 + $0x18] sm:$0xff]
  %v68 = vld [vmem:[%s2] sm:$0x1]
  %v70 = vperm.slane %v68, 0
  %vm72 = vcmask 261120
  %v74 = vsel %vm72, %v16, 0
  %v77 = vsel %vm72, %v17, 0
  %v80 = vsel %vm72, %v18, 0
  %v83 = vsel %vm72, %v19, 0
  %v86 = vsel %vm72, %v20, 0
  %v89 = vsel %vm72, %v21, 0
  %v92 = vsel %vm72, %v22, 0
  %v95 = vsel %vm72, %v23, 0
  %v98 = vsel %vm72, %v24, 0
  %v101 = vsel %vm72, %v25, 0
  %v104 = vsel %vm72, %v26, 0
  %v107 = vsel %vm72, %v27, 0
  %v110 = vsel %vm72, %v28, 0
  %v113 = vsel %vm72, %v29, 0
  %v116 = vsel %vm72, %v30, 0
  %v119 = vsel %vm72, %v31, 0
  %v122 = vsel %vm72, %v32, 0
  %v125 = vsel %vm72, %v33, 0
  %v128 = vsel %vm72, %v34, 0
  %v131 = vsel %vm72, %v35, 0
  %v134 = vsel %vm72, %v36, 0
  %v137 = vsel %vm72, %v37, 0
  %v140 = vsel %vm72, %v38, 0
  %v143 = vsel %vm72, %v39, 0
  %v146 = vsel %vm72, %v40, 0
  %v149 = vsel %vm72, %v41, 0
  %v152 = vsel %vm72, %v42, 0
  %v155 = vsel %vm72, %v43, 0
  %v158 = vsel %vm72, %v44, 0
  %v161 = vsel %vm72, %v45, 0
  %v164 = vsel %vm72, %v46, 0
  %v167 = vsel %vm72, %v47, 0
  %v170 = vsel %vm72, %v48, 0
  %v173 = vsel %vm72, %v49, 0
  %v176 = vsel %vm72, %v50, 0
  %v179 = vsel %vm72, %v51, 0
  %v182 = vsel %vm72, %v52, 0
  %v185 = vsel %vm72, %v53, 0
  %v188 = vsel %vm72, %v54, 0
  %v191 = vsel %vm72, %v55, 0
  %v194 = vsel %vm72, %v56, 0
  %v197 = vsel %vm72, %v57, 0
  %v200 = vsel %vm72, %v58, 0
  %v203 = vsel %vm72, %v59, 0
  %v206 = vsel %vm72, %v60, 0
  %v209 = vsel %vm72, %v61, 0
  %v212 = vsel %vm72, %v62, 0
  %v215 = vsel %vm72, %v63, 0
  %217 = vmatpush.msra.mxu0 0.0
  %218 = vmatpush.msra.mxu0 0.0
  %219 = vmatpush.msra.mxu0 0.0
  %220 = vmatpush.msra.mxu0 0.0
  %221 = vmatpush.msra.mxu0 0.0
  %222 = vmatpush.msra.mxu0 0.0
  %223 = vmatpush.msra.mxu0 0.0
  %224 = vmatpush.msra.mxu0 0.0
  %225 = vmatpush.msra.mxu0 0.0
  %226 = vmatpush.msra.mxu0 0.0
  %227 = vmatpush.msra.mxu0 0.0
  %228 = vmatpush.msra.mxu0 0.0
  %229 = vmatpush.msra.mxu0 %v67
  %230 = vmatpush.msra.mxu0 %v66
  %231 = vmatpush.msra.mxu0 %v65
  %232 = vmatpush.msra.mxu0 %v64
  %233 = vmatmul.f32.gmra.mxu0 %v74
  %v234 = vpop.f32.mrf.mxu0
  %v235 = vadd.f32 %v70, %v234
  %236 = vmatmul.f32.gmra.mxu0 %v77
  %v237 = vpop.f32.mrf.mxu0
  %v238 = vadd.f32 %v70, %v237
  %239 = vmatmul.f32.gmra.mxu0 %v80
  %v240 = vpop.f32.mrf.mxu0
  %v241 = vadd.f32 %v70, %v240
  %242 = vmatmul.f32.gmra.mxu0 %v83
  %v243 = vpop.f32.mrf.mxu0
  %v244 = vadd.f32 %v70, %v243
  %245 = vmatmul.f32.gmra.mxu0 %v86
  %v246 = vpop.f32.mrf.mxu0
  %v247 = vadd.f32 %v70, %v246
  %248 = vmatmul.f32.gmra.mxu0 %v89
  %v249 = vpop.f32.mrf.mxu0
  %v250 = vadd.f32 %v70, %v249
  %251 = vmatmul.f32.gmra.mxu0 %v92
  %v252 = vpop.f32.mrf.mxu0
  %v253 = vadd.f32 %v70, %v252
  %254 = vmatmul.f32.gmra.mxu0 %v95
  %v255 = vpop.f32.mrf.mxu0
  %v256 = vadd.f32 %v70, %v255
  %257 = vmatmul.f32.gmra.mxu0 %v98
  %v258 = vpop.f32.mrf.mxu0
  %v259 = vadd.f32 %v70, %v258
  %260 = vmatmul.f32.gmra.mxu0 %v101
  %v261 = vpop.f32.mrf.mxu0
  %v262 = vadd.f32 %v70, %v261
  %263 = vmatmul.f32.gmra.mxu0 %v104
  %v264 = vpop.f32.mrf.mxu0
  %v265 = vadd.f32 %v70, %v264
  %266 = vmatmul.f32.gmra.mxu0 %v107
  %v267 = vpop.f32.mrf.mxu0
  %v268 = vadd.f32 %v70, %v267
  %269 = vmatmul.f32.gmra.mxu0 %v110
  %v270 = vpop.f32.mrf.mxu0
  %v271 = vadd.f32 %v70, %v270
  %272 = vmatmul.f32.gmra.mxu0 %v113
  %v273 = vpop.f32.mrf.mxu0
  %v274 = vadd.f32 %v70, %v273
  %275 = vmatmul.f32.gmra.mxu0 %v116
  %v276 = vpop.f32.mrf.mxu0
  %v277 = vadd.f32 %v70, %v276
  %278 = vmatmul.f32.gmra.mxu0 %v119
  %v279 = vpop.f32.mrf.mxu0
  %v280 = vadd.f32 %v70, %v279
  %281 = vmatmul.f32.gmra.mxu0 %v122
  %v282 = vpop.f32.mrf.mxu0
  %v283 = vadd.f32 %v70, %v282
  %284 = vmatmul.f32.gmra.mxu0 %v125
  %v285 = vpop.f32.mrf.mxu0
  %v286 = vadd.f32 %v70, %v285
  %287 = vmatmul.f32.gmra.mxu0 %v128
  %v288 = vpop.f32.mrf.mxu0
  %v289 = vadd.f32 %v70, %v288
  %290 = vmatmul.f32.gmra.mxu0 %v131
  %v291 = vpop.f32.mrf.mxu0
  %v292 = vadd.f32 %v70, %v291
  %293 = vmatmul.f32.gmra.mxu0 %v134
  %v294 = vpop.f32.mrf.mxu0
  %v295 = vadd.f32 %v70, %v294
  %296 = vmatmul.f32.gmra.mxu0 %v137
  %v297 = vpop.f32.mrf.mxu0
  %v298 = vadd.f32 %v70, %v297
  %299 = vmatmul.f32.gmra.mxu0 %v140
  %v300 = vpop.f32.mrf.mxu0
  %v301 = vadd.f32 %v70, %v300
  %302 = vmatmul.f32.gmra.mxu0 %v143
  %v303 = vpop.f32.mrf.mxu0
  %v304 = vadd.f32 %v70, %v303
  %305 = vmatmul.f32.gmra.mxu0 %v146
  %v306 = vpop.f32.mrf.mxu0
  %v307 = vadd.f32 %v70, %v306
  %308 = vmatmul.f32.gmra.mxu0 %v149
  %v309 = vpop.f32.mrf.mxu0
  %v310 = vadd.f32 %v70, %v309
  %311 = vmatmul.f32.gmra.mxu0 %v152
  %v312 = vpop.f32.mrf.mxu0
  %v313 = vadd.f32 %v70, %v312
  %314 = vmatmul.f32.gmra.mxu0 %v155
  %v315 = vpop.f32.mrf.mxu0
  %v316 = vadd.f32 %v70, %v315
  %317 = vmatmul.f32.gmra.mxu0 %v158
  %v318 = vpop.f32.mrf.mxu0
  %v319 = vadd.f32 %v70, %v318
  %320 = vmatmul.f32.gmra.mxu0 %v161
  %v321 = vpop.f32.mrf.mxu0
  %v322 = vadd.f32 %v70, %v321
  %323 = vmatmul.f32.gmra.mxu0 %v164
  %v324 = vpop.f32.mrf.mxu0
  %v325 = vadd.f32 %v70, %v324
  %326 = vmatmul.f32.gmra.mxu0 %v167
  %v327 = vpop.f32.mrf.mxu0
  %v328 = vadd.f32 %v70, %v327
  %329 = vmatmul.f32.gmra.mxu0 %v170
  %v330 = vpop.f32.mrf.mxu0
  %v331 = vadd.f32 %v70, %v330
  %332 = vmatmul.f32.gmra.mxu0 %v173
  %v333 = vpop.f32.mrf.mxu0
  %v334 = vadd.f32 %v70, %v333
  %335 = vmatmul.f32.gmra.mxu0 %v176
  %v336 = vpop.f32.mrf.mxu0
  %v337 = vadd.f32 %v70, %v336
  %338 = vmatmul.f32.gmra.mxu0 %v179
  %v339 = vpop.f32.mrf.mxu0
  %v340 = vadd.f32 %v70, %v339
  %341 = vmatmul.f32.gmra.mxu0 %v182
  %v342 = vpop.f32.mrf.mxu0
  %v343 = vadd.f32 %v70, %v342
  %344 = vmatmul.f32.gmra.mxu0 %v185
  %v345 = vpop.f32.mrf.mxu0
  %v346 = vadd.f32 %v70, %v345
  %347 = vmatmul.f32.gmra.mxu0 %v188
  %v348 = vpop.f32.mrf.mxu0
  %v349 = vadd.f32 %v70, %v348
  %350 = vmatmul.f32.gmra.mxu0 %v191
  %v351 = vpop.f32.mrf.mxu0
  %v352 = vadd.f32 %v70, %v351
  %353 = vmatmul.f32.gmra.mxu0 %v194
  %v354 = vpop.f32.mrf.mxu0
  %v355 = vadd.f32 %v70, %v354
  %356 = vmatmul.f32.gmra.mxu0 %v197
  %v357 = vpop.f32.mrf.mxu0
  %v358 = vadd.f32 %v70, %v357
  %359 = vmatmul.f32.gmra.mxu0 %v200
  %v360 = vpop.f32.mrf.mxu0
  %v361 = vadd.f32 %v70, %v360
  %362 = vmatmul.f32.gmra.mxu0 %v203
  %v363 = vpop.f32.mrf.mxu0
  %v364 = vadd.f32 %v70, %v363
  %365 = vmatmul.f32.gmra.mxu0 %v206
  %v366 = vpop.f32.mrf.mxu0
  %v367 = vadd.f32 %v70, %v366
  %368 = vmatmul.f32.gmra.mxu0 %v209
  %v369 = vpop.f32.mrf.mxu0
  %v370 = vadd.f32 %v70, %v369
  %371 = vmatmul.f32.gmra.mxu0 %v212
  %v372 = vpop.f32.mrf.mxu0
  %v373 = vadd.f32 %v70, %v372
  %374 = vmatmul.f32.gmra.mxu0 %v215
  %v375 = vpop.f32.mrf.mxu0
  %v376 = vadd.f32 %v70, %v375
  %377 = vdwg.mxu0
  %vm378 = vcmask 23552
  %379 = vst.msk [vmem:[%s3] sm:$0xff] %vm378, %v235
  %380 = vst.msk [vmem:[%s3 + $0x8] sm:$0xff] %vm378, %v238
  %381 = vst.msk [vmem:[%s3 + $0x10] sm:$0xff] %vm378, %v241
  %382 = vst.msk [vmem:[%s3 + $0x18] sm:$0xff] %vm378, %v244
  %383 = vst.msk [vmem:[%s3 + $0x20] sm:$0xff] %vm378, %v247
  %384 = vst.msk [vmem:[%s3 + $0x28] sm:$0xff] %vm378, %v250
  %385 = vst.msk [vmem:[%s3 + $0x30] sm:$0xff] %vm378, %v253
  %386 = vst.msk [vmem:[%s3 + $0x38] sm:$0xff] %vm378, %v256
  %387 = vst.msk [vmem:[%s3 + $0x40] sm:$0xff] %vm378, %v259
  %388 = vst.msk [vmem:[%s3 + $0x48] sm:$0xff] %vm378, %v262
  %389 = vst.msk [vmem:[%s3 + $0x50] sm:$0xff] %vm378, %v265
  %390 = vst.msk [vmem:[%s3 + $0x58] sm:$0xff] %vm378, %v268
  %391 = vst.msk [vmem:[%s3 + $0x60] sm:$0xff] %vm378, %v271
  %392 = vst.msk [vmem:[%s3 + $0x68] sm:$0xff] %vm378, %v274
  %393 = vst.msk [vmem:[%s3 + $0x70] sm:$0xff] %vm378, %v277
  %394 = vst.msk [vmem:[%s3 + $0x78] sm:$0xff] %vm378, %v280
  %395 = vst.msk [vmem:[%s3 + $0x80] sm:$0xff] %vm378, %v283
  %396 = vst.msk [vmem:[%s3 + $0x88] sm:$0xff] %vm378, %v286
  %397 = vst.msk [vmem:[%s3 + $0x90] sm:$0xff] %vm378, %v289
  %398 = vst.msk [vmem:[%s3 + $0x98] sm:$0xff] %vm378, %v292
  %399 = vst.msk [vmem:[%s3 + $0xa0] sm:$0xff] %vm378, %v295
  %400 = vst.msk [vmem:[%s3 + $0xa8] sm:$0xff] %vm378, %v298
  %401 = vst.msk [vmem:[%s3 + $0xb0] sm:$0xff] %vm378, %v301
  %402 = vst.msk [vmem:[%s3 + $0xb8] sm:$0xff] %vm378, %v304
  %403 = vst.msk [vmem:[%s3 + $0xc0] sm:$0xff] %vm378, %v307
  %404 = vst.msk [vmem:[%s3 + $0xc8] sm:$0xff] %vm378, %v310
  %405 = vst.msk [vmem:[%s3 + $0xd0] sm:$0xff] %vm378, %v313
  %406 = vst.msk [vmem:[%s3 + $0xd8] sm:$0xff] %vm378, %v316
  %407 = vst.msk [vmem:[%s3 + $0xe0] sm:$0xff] %vm378, %v319
  %408 = vst.msk [vmem:[%s3 + $0xe8] sm:$0xff] %vm378, %v322
  %409 = vst.msk [vmem:[%s3 + $0xf0] sm:$0xff] %vm378, %v325
  %410 = vst.msk [vmem:[%s3 + $0xf8] sm:$0xff] %vm378, %v328
  %411 = vst.msk [vmem:[%s3 + $0x100] sm:$0xff] %vm378, %v331
  %412 = vst.msk [vmem:[%s3 + $0x108] sm:$0xff] %vm378, %v334
  %413 = vst.msk [vmem:[%s3 + $0x110] sm:$0xff] %vm378, %v337
  %414 = vst.msk [vmem:[%s3 + $0x118] sm:$0xff] %vm378, %v340
  %415 = vst.msk [vmem:[%s3 + $0x120] sm:$0xff] %vm378, %v343
  %416 = vst.msk [vmem:[%s3 + $0x128] sm:$0xff] %vm378, %v346
  %417 = vst.msk [vmem:[%s3 + $0x130] sm:$0xff] %vm378, %v349
  %418 = vst.msk [vmem:[%s3 + $0x138] sm:$0xff] %vm378, %v352
  %419 = vst.msk [vmem:[%s3 + $0x140] sm:$0xff] %vm378, %v355
  %420 = vst.msk [vmem:[%s3 + $0x148] sm:$0xff] %vm378, %v358
  %421 = vst.msk [vmem:[%s3 + $0x150] sm:$0xff] %vm378, %v361
  %422 = vst.msk [vmem:[%s3 + $0x158] sm:$0xff] %vm378, %v364
  %423 = vst.msk [vmem:[%s3 + $0x160] sm:$0xff] %vm378, %v367
  %424 = vst.msk [vmem:[%s3 + $0x168] sm:$0xff] %vm378, %v370
  %425 = vst.msk [vmem:[%s3 + $0x170] sm:$0xff] %vm378, %v373
  %426 = vst.msk [vmem:[%s3 + $0x178] sm:$0xff] %vm378, %v376
  %475 = vrot.lane.b32.xlu0 %v235, 125
  %v476 = vpop.permute.xlu0 %475
  %477 = vrot.lane.b32.xlu0 %v238, 125
  %v478 = vpop.permute.xlu0 %477
  %479 = vrot.lane.b32.xlu0 %v241, 125
  %v480 = vpop.permute.xlu0 %479
  %481 = vrot.lane.b32.xlu0 %v244, 125
  %v482 = vpop.permute.xlu0 %481
  %483 = vrot.lane.b32.xlu0 %v247, 125
  %v484 = vpop.permute.xlu0 %483
  %485 = vrot.lane.b32.xlu0 %v250, 125
  %v486 = vpop.permute.xlu0 %485
  %487 = vrot.lane.b32.xlu0 %v253, 125
  %v488 = vpop.permute.xlu0 %487
  %489 = vrot.lane.b32.xlu0 %v256, 125
  %v490 = vpop.permute.xlu0 %489
  %491 = vrot.lane.b32.xlu0 %v259, 125
  %v492 = vpop.permute.xlu0 %491
  %493 = vrot.lane.b32.xlu0 %v262, 125
  %v494 = vpop.permute.xlu0 %493
  %495 = vrot.lane.b32.xlu0 %v265, 125
  %v496 = vpop.permute.xlu0 %495
  %497 = vrot.lane.b32.xlu0 %v268, 125
  %v498 = vpop.permute.xlu0 %497
  %499 = vrot.lane.b32.xlu0 %v271, 125
  %v500 = vpop.permute.xlu0 %499
  %501 = vrot.lane.b32.xlu0 %v274, 125
  %v502 = vpop.permute.xlu0 %501
  %503 = vrot.lane.b32.xlu0 %v277, 125
  %v504 = vpop.permute.xlu0 %503
  %505 = vrot.lane.b32.xlu0 %v280, 125
  %v506 = vpop.permute.xlu0 %505
  %507 = vrot.lane.b32.xlu0 %v283, 125
  %v508 = vpop.permute.xlu0 %507
  %509 = vrot.lane.b32.xlu0 %v286, 125
  %v510 = vpop.permute.xlu0 %509
  %511 = vrot.lane.b32.xlu0 %v289, 125
  %v512 = vpop.permute.xlu0 %511
  %513 = vrot.lane.b32.xlu0 %v292, 125
  %v514 = vpop.permute.xlu0 %513
  %515 = vrot.lane.b32.xlu0 %v295, 125
  %v516 = vpop.permute.xlu0 %515
  %517 = vrot.lane.b32.xlu0 %v298, 125
  %v518 = vpop.permute.xlu0 %517
  %519 = vrot.lane.b32.xlu0 %v301, 125
  %v520 = vpop.permute.xlu0 %519
  %521 = vrot.lane.b32.xlu0 %v304, 125
  %v522 = vpop.permute.xlu0 %521
  %523 = vrot.lane.b32.xlu0 %v307, 125
  %v524 = vpop.permute.xlu0 %523
  %525 = vrot.lane.b32.xlu0 %v310, 125
  %v526 = vpop.permute.xlu0 %525
  %527 = vrot.lane.b32.xlu0 %v313, 125
  %v528 = vpop.permute.xlu0 %527
  %529 = vrot.lane.b32.xlu0 %v316, 125
  %v530 = vpop.permute.xlu0 %529
  %531 = vrot.lane.b32.xlu0 %v319, 125
  %v532 = vpop.permute.xlu0 %531
  %533 = vrot.lane.b32.xlu0 %v322, 125
  %v534 = vpop.permute.xlu0 %533
  %535 = vrot.lane.b32.xlu0 %v325, 125
  %v536 = vpop.permute.xlu0 %535
  %537 = vrot.lane.b32.xlu0 %v328, 125
  %v538 = vpop.permute.xlu0 %537
  %539 = vrot.lane.b32.xlu0 %v331, 125
  %v540 = vpop.permute.xlu0 %539
  %541 = vrot.lane.b32.xlu0 %v334, 125
  %v542 = vpop.permute.xlu0 %541
  %543 = vrot.lane.b32.xlu0 %v337, 125
  %v544 = vpop.permute.xlu0 %543
  %545 = vrot.lane.b32.xlu0 %v340, 125
  %v546 = vpop.permute.xlu0 %545
  %547 = vrot.lane.b32.xlu0 %v343, 125
  %v548 = vpop.permute.xlu0 %547
  %549 = vrot.lane.b32.xlu0 %v346, 125
  %v550 = vpop.permute.xlu0 %549
  %551 = vrot.lane.b32.xlu0 %v349, 125
  %v552 = vpop.permute.xlu0 %551
  %553 = vrot.lane.b32.xlu0 %v352, 125
  %v554 = vpop.permute.xlu0 %553
  %555 = vrot.lane.b32.xlu0 %v355, 125
  %v556 = vpop.permute.xlu0 %555
  %557 = vrot.lane.b32.xlu0 %v358, 125
  %v558 = vpop.permute.xlu0 %557
  %559 = vrot.lane.b32.xlu0 %v361, 125
  %v560 = vpop.permute.xlu0 %559
  %561 = vrot.lane.b32.xlu0 %v364, 125
  %v562 = vpop.permute.xlu0 %561
  %563 = vrot.lane.b32.xlu0 %v367, 125
  %v564 = vpop.permute.xlu0 %563
  %565 = vrot.lane.b32.xlu0 %v370, 125
  %v566 = vpop.permute.xlu0 %565
  %567 = vrot.lane.b32.xlu0 %v373, 125
  %v568 = vpop.permute.xlu0 %567
  %569 = vrot.lane.b32.xlu0 %v376, 125
  %v570 = vpop.permute.xlu0 %569
  %619 = vst.msk [vmem:[%s4] sm:$0xff] %vm378, %v476
  %620 = vst.msk [vmem:[%s4 + $0x8] sm:$0xff] %vm378, %v478
  %621 = vst.msk [vmem:[%s4 + $0x10] sm:$0xff] %vm378, %v480
  %622 = vst.msk [vmem:[%s4 + $0x18] sm:$0xff] %vm378, %v482
  %623 = vst.msk [vmem:[%s4 + $0x20] sm:$0xff] %vm378, %v484
  %624 = vst.msk [vmem:[%s4 + $0x28] sm:$0xff] %vm378, %v486
  %625 = vst.msk [vmem:[%s4 + $0x30] sm:$0xff] %vm378, %v488
  %626 = vst.msk [vmem:[%s4 + $0x38] sm:$0xff] %vm378, %v490
  %627 = vst.msk [vmem:[%s4 + $0x40] sm:$0xff] %vm378, %v492
  %628 = vst.msk [vmem:[%s4 + $0x48] sm:$0xff] %vm378, %v494
  %629 = vst.msk [vmem:[%s4 + $0x50] sm:$0xff] %vm378, %v496
  %630 = vst.msk [vmem:[%s4 + $0x58] sm:$0xff] %vm378, %v498
  %631 = vst.msk [vmem:[%s4 + $0x60] sm:$0xff] %vm378, %v500
  %632 = vst.msk [vmem:[%s4 + $0x68] sm:$0xff] %vm378, %v502
  %633 = vst.msk [vmem:[%s4 + $0x70] sm:$0xff] %vm378, %v504
  %634 = vst.msk [vmem:[%s4 + $0x78] sm:$0xff] %vm378, %v506
  %635 = vst.msk [vmem:[%s4 + $0x80] sm:$0xff] %vm378, %v508
  %636 = vst.msk [vmem:[%s4 + $0x88] sm:$0xff] %vm378, %v510
  %637 = vst.msk [vmem:[%s4 + $0x90] sm:$0xff] %vm378, %v512
  %638 = vst.msk [vmem:[%s4 + $0x98] sm:$0xff] %vm378, %v514
  %639 = vst.msk [vmem:[%s4 + $0xa0] sm:$0xff] %vm378, %v516
  %640 = vst.msk [vmem:[%s4 + $0xa8] sm:$0xff] %vm378, %v518
  %641 = vst.msk [vmem:[%s4 + $0xb0] sm:$0xff] %vm378, %v520
  %642 = vst.msk [vmem:[%s4 + $0xb8] sm:$0xff] %vm378, %v522
  %643 = vst.msk [vmem:[%s4 + $0xc0] sm:$0xff] %vm378, %v524
  %644 = vst.msk [vmem:[%s4 + $0xc8] sm:$0xff] %vm378, %v526
  %645 = vst.msk [vmem:[%s4 + $0xd0] sm:$0xff] %vm378, %v528
  %646 = vst.msk [vmem:[%s4 + $0xd8] sm:$0xff] %vm378, %v530
  %647 = vst.msk [vmem:[%s4 + $0xe0] sm:$0xff] %vm378, %v532
  %648 = vst.msk [vmem:[%s4 + $0xe8] sm:$0xff] %vm378, %v534
  %649 = vst.msk [vmem:[%s4 + $0xf0] sm:$0xff] %vm378, %v536
  %650 = vst.msk [vmem:[%s4 + $0xf8] sm:$0xff] %vm378, %v538
  %651 = vst.msk [vmem:[%s4 + $0x100] sm:$0xff] %vm378, %v540
  %652 = vst.msk [vmem:[%s4 + $0x108] sm:$0xff] %vm378, %v542
  %653 = vst.msk [vmem:[%s4 + $0x110] sm:$0xff] %vm378, %v544
  %654 = vst.msk [vmem:[%s4 + $0x118] sm:$0xff] %vm378, %v546
  %655 = vst.msk [vmem:[%s4 + $0x120] sm:$0xff] %vm378, %v548
  %656 = vst.msk [vmem:[%s4 + $0x128] sm:$0xff] %vm378, %v550
  %657 = vst.msk [vmem:[%s4 + $0x130] sm:$0xff] %vm378, %v552
  %658 = vst.msk [vmem:[%s4 + $0x138] sm:$0xff] %vm378, %v554
  %659 = vst.msk [vmem:[%s4 + $0x140] sm:$0xff] %vm378, %v556
  %660 = vst.msk [vmem:[%s4 + $0x148] sm:$0xff] %vm378, %v558
  %661 = vst.msk [vmem:[%s4 + $0x150] sm:$0xff] %vm378, %v560
  %662 = vst.msk [vmem:[%s4 + $0x158] sm:$0xff] %vm378, %v562
  %663 = vst.msk [vmem:[%s4 + $0x160] sm:$0xff] %vm378, %v564
  %664 = vst.msk [vmem:[%s4 + $0x168] sm:$0xff] %vm378, %v566
  %665 = vst.msk [vmem:[%s4 + $0x170] sm:$0xff] %vm378, %v568
  %666 = vst.msk [vmem:[%s4 + $0x178] sm:$0xff] %vm378, %v570
  // Predicated region
  $region14: #{_forward_impl.1} parent=0 // pred_check
    _
  $region15: #{_forward_impl.1} parent=0 // pred_check_branch
    %668 = sbr.rel (0) target = $region17
  $region16: #{_forward_impl.1} parent=0 // pred_region
    _
  $region17: #{_forward_impl.1} parent=0 // pred_fallthru
    _
  // Predicated region
  $region18: #{_forward_impl.1} parent=0 // pred_check
    _
  $region19: #{_forward_impl.1} parent=0 // pred_check_branch
    %670 = sbr.rel (0) target = $region21
  $region20: #{_forward_impl.1} parent=0 // pred_region
    _
  $region21: #{_forward_impl.1} parent=0 // pred_fallthru
    _
  // Predicated region
  $region22: #{_forward_impl.1} parent=0 // pred_check
    _
  $region23: #{_forward_impl.1} parent=0 // pred_check_branch
    %672 = sbr.rel (0) target = $region25
  $region24: #{_forward_impl.1} parent=0 // pred_region
    _
  $region25: #{_forward_impl.1} parent=0 // pred_fallthru
    _
  // Predicated region
  $region26: #{_forward_impl.1} parent=0 // pred_check
    _
  $region27: #{_forward_impl.1} parent=0 // pred_check_branch
    %674 = sbr.rel (0) target = $region29
  $region28: #{_forward_impl.1} parent=0 // pred_region
    _
  $region29: #{_forward_impl.1} parent=0 // pred_fallthru
    _

</llo_original>
